<compile_context>
chip_gen: v7x
topology: tpu7x:2x2x1
jax: 0.10.0
libtpu: 0.0.40
codegen_flags: <defaults>
</compile_context>

<pallas_src>
import functools

import jax
import jax.numpy as jnp
from jax.experimental import pallas as pl
from jax.experimental.pallas import tpu as pltpu

VMEM = pltpu.MemorySpace.VMEM


# ----------------------------- Pallas kernels ------------------------------

def _student_kernel(x_ref, w_ref, b_ref, raw_ref, act_ref, *, has_norm):
    # row-tile of X @ W + b, with fused leaky_relu (+ optional l2-normalize)
    raw = jnp.dot(x_ref[...], w_ref[...],
                  preferred_element_type=jnp.float32) + b_ref[...]
    raw_ref[...] = raw
    h = jnp.where(raw >= 0, raw, jnp.float32(0.01) * raw)
    if has_norm:
        ss = jnp.sum(h * h, axis=-1, keepdims=True)
        h = h * jax.lax.rsqrt(jnp.maximum(ss, jnp.float32(1e-24)))
    act_ref[...] = h


def student_transform(x, w, b, *, has_norm, tile_m=128):
    """Returns (raw = XW+b, processed = normalize?(leaky_relu(raw)))."""
    M, K = x.shape
    C = w.shape[1]
    Mp = pl.cdiv(M, tile_m) * tile_m
    x_p = jnp.pad(x, ((0, Mp - M), (0, 0)))
    raw, act = pl.pallas_call(
        functools.partial(_student_kernel, has_norm=has_norm),
        out_shape=(jax.ShapeDtypeStruct((Mp, C), jnp.float32),
                   jax.ShapeDtypeStruct((Mp, C), jnp.float32)),
        grid=(Mp // tile_m,),
        in_specs=[
            pl.BlockSpec((tile_m, K), lambda i: (i, 0)),
            pl.BlockSpec((K, C), lambda i: (0, 0)),
            pl.BlockSpec((1, C), lambda i: (0, 0)),
        ],
        out_specs=(pl.BlockSpec((tile_m, C), lambda i: (i, 0)),
                   pl.BlockSpec((tile_m, C), lambda i: (i, 0))),
        compiler_params=pltpu.CompilerParams(
            dimension_semantics=("parallel",)),
    )(x_p, w, b)
    return raw[:M], act[:M]


def _l2norm_kernel(x_ref, o_ref):
    x = x_ref[...]
    ss = jnp.sum(x * x, axis=-1, keepdims=True)
    o_ref[...] = x * jax.lax.rsqrt(jnp.maximum(ss, jnp.float32(1e-24)))


def l2_normalize(x):
    return pl.pallas_call(
        _l2norm_kernel,
        out_shape=jax.ShapeDtypeStruct(x.shape, jnp.float32),
        in_specs=[pl.BlockSpec(memory_space=VMEM)],
        out_specs=pl.BlockSpec(memory_space=VMEM),
    )(x)


def _gat_routing_kernel(pref_ref, x_ref, adj_ref, out_ref, *, has_norm):
    # Routing iteration: user-destination rows only, no attention-matrix
    # output, fused preference update + optional normalize.
    pref = pref_ref[...]                        # (U, C)  fp32
    xs = x_ref[...]                             # (Np, C) fp32
    mask = adj_ref[...] > 0                     # (U, Np) bf16 {0,1} mask
    xs_b = xs.astype(jnp.bfloat16)
    s = jax.lax.dot_general(pref.astype(jnp.bfloat16), xs_b,
                            (((1,), (1,)), ((), ())),
                            preferred_element_type=jnp.float32)   # (U, Np)
    neg = jnp.float32(-1e30)
    masked = jnp.where(mask, s, neg)            # fp32 softmax math
    m = jnp.max(masked, axis=-1, keepdims=True)
    e = jnp.where(mask, jnp.exp(masked - m), jnp.float32(0.0))
    denom = jnp.sum(e, axis=-1, keepdims=True)
    p = e * pl.reciprocal(jnp.maximum(denom, jnp.float32(1e-16)), approx=True)
    agg = jnp.dot(p.astype(jnp.bfloat16), xs_b,
                  preferred_element_type=jnp.float32)             # (U, C)
    new_pref = pref + agg
    if has_norm:
        ss = jnp.sum(new_pref * new_pref, axis=-1, keepdims=True)
        new_pref = new_pref * jax.lax.rsqrt(jnp.maximum(ss, jnp.float32(1e-24)))
    out_ref[...] = new_pref


def gat_routing_step(pref, x_pad, adj_u, *, has_norm):
    U, C = pref.shape
    return pl.pallas_call(
        functools.partial(_gat_routing_kernel, has_norm=has_norm),
        out_shape=jax.ShapeDtypeStruct((U, C), jnp.float32),
        in_specs=[pl.BlockSpec(memory_space=VMEM),
                  pl.BlockSpec(memory_space=VMEM),
                  pl.BlockSpec(memory_space=VMEM)],
        out_specs=pl.BlockSpec(memory_space=VMEM),
    )(pref, x_pad, adj_u)


def _gat_final_kernel(xd_ref, xs_ref, adj_ref, out_ref, p_ref, *, has_act):
    # Final bidirectional GAT: per dst-tile softmax + aggregation, fused
    # leaky_relu and residual add; writes the attention matrix (lane-dense).
    xd = xd_ref[...]                            # (T, C)  fp32
    xs = xs_ref[...]                            # (Np, C) fp32 (resident)
    mask = adj_ref[...] > 0                     # (T, Np)
    xs_b = xs.astype(jnp.bfloat16)
    s = jax.lax.dot_general(xd.astype(jnp.bfloat16), xs_b,
                            (((1,), (1,)), ((), ())),
                            preferred_element_type=jnp.float32)   # (T, Np)
    neg = jnp.float32(-1e30)
    masked = jnp.where(mask, s, neg)
    m = jnp.max(masked, axis=-1, keepdims=True)
    e = jnp.where(mask, jnp.exp(masked - m), jnp.float32(0.0))
    denom = jnp.sum(e, axis=-1, keepdims=True)
    p = e * pl.reciprocal(jnp.maximum(denom, jnp.float32(1e-16)), approx=True)
    p_ref[...] = p
    agg = jnp.dot(p.astype(jnp.bfloat16), xs_b,
                  preferred_element_type=jnp.float32)             # (T, C)
    if has_act:
        agg = jnp.where(agg >= 0, agg, jnp.float32(0.01) * agg)
    out_ref[...] = xd + agg


def gat_final(x_pad, adj_bi, *, has_act):
    Np, C = x_pad.shape
    tile = 256 if Np % 256 == 0 else 128        # dst-axis tile (Np is 128-mult)
    return pl.pallas_call(
        functools.partial(_gat_final_kernel, has_act=has_act),
        out_shape=(jax.ShapeDtypeStruct((Np, C), jnp.float32),
                   jax.ShapeDtypeStruct((Np, Np), jnp.float32)),
        grid=(Np // tile,),
        in_specs=[
            pl.BlockSpec((tile, C), lambda i: (i, 0)),   # dst rows tile
            pl.BlockSpec((Np, C), lambda i: (0, 0)),     # all src rows resident
            pl.BlockSpec((tile, Np), lambda i: (i, 0)),  # adjacency tile
        ],
        out_specs=(pl.BlockSpec((tile, C), lambda i: (i, 0)),
                   pl.BlockSpec((tile, Np), lambda i: (i, 0))),
        compiler_params=pltpu.CompilerParams(
            dimension_semantics=("parallel",)),
    )(x_pad, x_pad, adj_bi)


# -------------------------------- glue --------------------------------------

def _round_up(n, m):
    return pl.cdiv(n, m) * m


def cgcn_forward(params, features, edge_index, item_tensor, *,
                 num_user, num_routing, has_act, has_norm):
    num_item = features.shape[0]
    num_nodes = num_user + num_item
    dim_c = params["w_student"].shape[1]
    n_pad = _round_up(num_nodes, 128)           # lane-dense src / p axis

    # Reference splits `features` into 50 row segments before the student
    # transform; concatenating per-segment outputs == one full matmul.
    feats_raw, feats = student_transform(
        features, params["w_student"], params["b_student"], has_norm=has_norm)
    # feats == F.normalize?(F.leaky_relu(student(features))) == transfer path

    preference = params["preference"]
    if has_norm:
        preference = l2_normalize(preference)

    src = edge_index[0]
    dst = edge_index[1]

    # Routing adjacency: only user-destination rows are ever consumed.
    dst_u = jnp.where(dst < num_user, dst, num_user)      # OOB rows -> dropped
    adj_u = jnp.zeros((num_user, n_pad), jnp.bfloat16).at[dst_u, src].set(1.0)

    # Bidirectional adjacency for the final conv (padded, lane-dense).
    edge_bi = jnp.concatenate([edge_index, edge_index[::-1]], axis=1)
    adj_bi = jnp.zeros((n_pad, n_pad), jnp.bfloat16
                       ).at[edge_bi[1], edge_bi[0]].set(1.0)

    # Padded node-feature slab; item rows are fixed, user rows updated per iter.
    x_base = jnp.zeros((n_pad, dim_c), jnp.float32
                       ).at[num_user:num_nodes].set(feats)

    # TODO(synk): for very large graphs, tile the src axis / use a CSR +
    # scalar-prefetch formulation instead of keeping x and a dense adjacency
    # row-block fully VMEM-resident.
    for _ in range(num_routing):
        x_pad = x_base.at[:num_user].set(preference)
        preference = gat_routing_step(preference, x_pad, adj_u,
                                      has_norm=has_norm)

    x_pad = x_base.at[:num_user].set(preference)
    out_pad, p = gat_final(x_pad, adj_bi, has_act=has_act)
    out = out_pad[:num_nodes]                   # == x + leaky_relu?(x_hat)

    # per-edge attention coefficients of the final (bidirectional) conv
    alpha = p[edge_bi[1], edge_bi[0]].reshape(-1, 1)

    item_nodes = item_tensor - num_user
    tran_feature = feats_raw[item_nodes]        # reuse of student output
    # TODO(synk): FeatureExtractorModel's class/kd/feature losses are defined
    # in source not included with the reference module; returned as zeros.
    class_loss = jnp.float32(0.0)
    kd_loss = jnp.float32(0.0)
    feature_loss = jnp.float32(0.0)

    return (out, alpha, class_loss, kd_loss, feature_loss, tran_feature)


# -------------------------------- main ---------------------------------------

if __name__ == "__main__":
    key = jax.random.PRNGKey(0)
    num_user, num_item = 8, 24
    dim_feat, dim_C = 128, 128
    num_routing = 3
    has_act = True
    has_norm = True

    k1, k2, k3 = jax.random.split(key, 3)
    features = jax.random.normal(k1, (num_item, dim_feat), jnp.float32)

    # deterministic xavier-normal style parameter init (no checkpoint load)
    pref_std = (2.0 / (num_user + dim_C)) ** 0.5
    w_std = (2.0 / (dim_feat + dim_C)) ** 0.5
    params = {
        "preference": pref_std * jax.random.normal(
            k2, (num_user, dim_C), jnp.float32),
        "w_student": w_std * jax.random.normal(
            k3, (dim_feat, dim_C), jnp.float32),
        "b_student": jnp.zeros((1, dim_C), jnp.float32),
    }

    # bipartite edges (item node -> user), 3 distinct items per user, so the
    # routing loop's x_hat_1[:num_user] is non-trivial.
    users = jnp.repeat(jnp.arange(num_user), 3)
    items = jnp.arange(num_user * 3) % num_item
    edge_index = jnp.stack([num_user + items, users]).astype(jnp.int32)
    item_tensor = (num_user + jnp.arange(num_item)).astype(jnp.int32)

    out = cgcn_forward(params, features, edge_index, item_tensor,
                       num_user=num_user, num_routing=num_routing,
                       has_act=has_act, has_norm=has_norm)
    jax.block_until_ready(out)
    print("KERNEL_OK")
</pallas_src>

<mosaic_0001>
module attributes {stable_mosaic.version = 11 : i64} {
  func.func @_student_kernel(%arg0: i32, %arg1: memref<128x128xf32, #tpu.memory_space<vmem>>, %arg2: memref<128x128xf32, #tpu.memory_space<vmem>>, %arg3: memref<1x128xf32, #tpu.memory_space<vmem>>, %arg4: memref<128x128xf32, #tpu.memory_space<vmem>>, %arg5: memref<128x128xf32, #tpu.memory_space<vmem>>) attributes {dimension_semantics = [#tpu.dimension_semantics<parallel>], iteration_bounds = array<i64: 1>, scalar_prefetch = 0 : i64, scratch_operands = 0 : i64, tpu.core_type = #tpu.core_type<tc>, window_params = [{transform_indices = @transform_0, window_bounds = array<i64: 128, 128>}, {pipeline_mode = #tpu.pipeline_mode<synchronous>, transform_indices = @transform_1, window_bounds = array<i64: 128, 128>}, {pipeline_mode = #tpu.pipeline_mode<synchronous>, transform_indices = @transform_2, window_bounds = array<i64: 1, 128>}, {transform_indices = @transform_3, window_bounds = array<i64: 128, 128>}, {transform_indices = @transform_4, window_bounds = array<i64: 128, 128>}]} {
    %c0 = arith.constant 0 : index
    %c0_0 = arith.constant 0 : index
    %0 = vector.load %arg1[%c0, %c0_0] : memref<128x128xf32, #tpu.memory_space<vmem>>, vector<128x128xf32>
    %c0_1 = arith.constant 0 : index
    %c0_2 = arith.constant 0 : index
    %1 = vector.load %arg2[%c0_1, %c0_2] : memref<128x128xf32, #tpu.memory_space<vmem>>, vector<128x128xf32>
    %cst = arith.constant dense<0.000000e+00> : vector<128x128xf32>
    %2 = tpu.matmul %0, %1, %cst {dimension_numbers = #tpu.dot_dimension_numbers<[1], [0], [0], [1], [0, 0, 1, 1], [], []>} : vector<128x128xf32>, vector<128x128xf32>, vector<128x128xf32> -> vector<128x128xf32>
    %c0_3 = arith.constant 0 : index
    %c0_4 = arith.constant 0 : index
    %3 = vector.load %arg3[%c0_3, %c0_4] : memref<1x128xf32, #tpu.memory_space<vmem>>, vector<1x128xf32>
    %4 = vector.broadcast %3 : vector<1x128xf32> to vector<128x128xf32>
    %5 = arith.addf %2, %4 : vector<128x128xf32>
    %c0_5 = arith.constant 0 : index
    %c0_6 = arith.constant 0 : index
    %6 = vector.load %arg4[%c0_5, %c0_6] : memref<128x128xf32, #tpu.memory_space<vmem>>, vector<128x128xf32>
    tpu.vector_store %arg4[%c0_5, %c0_6], %5 {strides = array<i32>} : memref<128x128xf32, #tpu.memory_space<vmem>>, vector<128x128xf32>,
    %cst_7 = arith.constant 0.000000e+00 : f32
    %7 = vector.broadcast %cst_7 : f32 to vector<128x128xf32>
    %8 = arith.cmpf oge, %5, %7 : vector<128x128xf32>
    %cst_8 = arith.constant 0.00999999977 : f32
    %9 = vector.broadcast %cst_8 : f32 to vector<128x128xf32>
    %10 = arith.mulf %9, %5 : vector<128x128xf32>
    %11 = arith.select %8, %5, %10 : vector<128x128xi1>, vector<128x128xf32>
    %12 = arith.mulf %11, %11 : vector<128x128xf32>
    %cst_9 = arith.constant dense<0.000000e+00> : vector<128xf32>
    %13 = vector.multi_reduction <add>, %12, %cst_9 [1] : vector<128x128xf32> to vector<128xf32>
    %14 = vector.shape_cast %13 : vector<128xf32> to vector<128x1xf32>
    %cst_10 = arith.constant 1.000000e-24 : f32
    %15 = vector.broadcast %cst_10 : f32 to vector<128x1xf32>
    %16 = arith.maximumf %14, %15 : vector<128x1xf32>
    %17 = math.rsqrt %16 : vector<128x1xf32>
    %18 = vector.broadcast %17 : vector<128x1xf32> to vector<128x128xf32>
    %19 = arith.mulf %11, %18 : vector<128x128xf32>
    %c0_11 = arith.constant 0 : index
    %c0_12 = arith.constant 0 : index
    %20 = vector.load %arg5[%c0_11, %c0_12] : memref<128x128xf32, #tpu.memory_space<vmem>>, vector<128x128xf32>
    tpu.vector_store %arg5[%c0_11, %c0_12], %19 {strides = array<i32>} : memref<128x128xf32, #tpu.memory_space<vmem>>, vector<128x128xf32>,
    return
  }
  func.func @transform_0(%arg0: i32) -> (i32, i32) {
    %c0_i32 = arith.constant 0 : i32
    %c0_i32_0 = arith.constant 0 : i32
    return %arg0, %c0_i32 : i32, i32
  }
  func.func @transform_1(%arg0: i32) -> (i32, i32) {
    %c0_i32 = arith.constant 0 : i32
    %c0_i32_0 = arith.constant 0 : i32
    %c0_i32_1 = arith.constant 0 : i32
    return %c0_i32, %c0_i32_0 : i32, i32
  }
  func.func @transform_2(%arg0: i32) -> (i32, i32) {
    %c0_i32 = arith.constant 0 : i32
    %c0_i32_0 = arith.constant 0 : i32
    %c0_i32_1 = arith.constant 0 : i32
    return %c0_i32, %c0_i32_0 : i32, i32
  }
  func.func @transform_3(%arg0: i32) -> (i32, i32) {
    %c0_i32 = arith.constant 0 : i32
    %c0_i32_0 = arith.constant 0 : i32
    return %arg0, %c0_i32 : i32, i32
  }
  func.func @transform_4(%arg0: i32) -> (i32, i32) {
    %c0_i32 = arith.constant 0 : i32
    %c0_i32_0 = arith.constant 0 : i32
    return %arg0, %c0_i32 : i32, i32
  }
}

</mosaic_0001>

<llo_original>
// kernel: tpu_custom_call.1
$region0: #{tpu_custom_call.1}
  #allocation0 [shape = 'u32[]', space=smem, size = 0x4, offset = 0x4, fixed_abs, tag = 'smem constant byte address 0x4 - core index']
  #allocation1 [shape = 'u32[144,128]{1,0:T(1,128)}', space=vmem, size = 0x12000, scoped, tag = 'internal scratch']
  %s0 = inlined_call_operand.hbm [shape: f32[128,128], index: 0, kind: input, shape index: {}]
  %s1 = inlined_call_operand.hbm [shape: f32[128,128], index: 1, kind: input, shape index: {}]
  %s2 = inlined_call_operand.vmem [shape: f32[1,128], index: 2, kind: input, shape index: {}]
  %s3 = inlined_call_operand.hbm [shape: f32[128,128], index: 3, kind: output, shape index: {0}]
  %s4 = inlined_call_operand.hbm [shape: f32[128,128], index: 4, kind: output, shape index: {1}]
  %5 = xla_tuple %s3, %s4
  %s6 = sld [smem:[#allocation0]]
  $region38: #{tpu_custom_call.1} parent=0
    _
  %s8 = ssub.s32 1, %s6
  %s9 = scalar_select 0, %s8, %s6
  $region1: #{tpu_custom_call.1} parent=0
    #allocation2 [shape = 'u8[65536]{0}', space=vmem, size = 0x10000, scoped, tag = 'input window, operand 0, single buffered']
    #allocation3 [shape = 's32[1]{0}', space=sflag, size = 0x4, scoped, tag = 'scoped memory for tpu_custom_call.1']
    #allocation4 [shape = 's32[1]{0}', space=sflag, size = 0x4, scoped, tag = 'scoped memory for tpu_custom_call.1']
    #allocation5 [shape = 'u8[65536]{0}', space=vmem, size = 0x10000, scoped, tag = 'input window, operand 1, single buffered']
    #allocation6 [shape = 's32[1]{0}', space=sflag, size = 0x4, scoped, tag = 'scoped memory for tpu_custom_call.1']
    #allocation7 [shape = 'u8[65536]{0}', space=vmem, size = 0x10000, scoped, tag = 'output window, operand 0, single buffered']
    #allocation8 [shape = 'u8[65536]{0}', space=vmem, size = 0x10000, scoped, tag = 'output window, operand 1, single buffered']
    #allocation9 [shape = 's32[1]{0}', space=sflag, size = 0x4, scoped, tag = 'scoped memory for tpu_custom_call.1']
    %10 = vsyncpa [#allocation3], 0
    %11 = vsyncpa [#allocation6], 0
    %12 = vsyncpa [#allocation4], 0
    %13 = vsyncpa [#allocation9], 0
    // Predicated region
    $region2: #{tpu_custom_call.1} parent=1 // pred_check
      _
    $region3: #{tpu_custom_call.1} parent=1 // pred_check_branch
      %15 = sbr.rel (0) target = $region5
    $region4: #{tpu_custom_call.1} parent=1 // pred_region
      %s17 = ssub.s32 2048, 2048
      %18 = vsyncadd [#allocation3], %s17
      %s19 = sshll.u32 [#allocation2], 4
      %s20 = int_to_ptr.vmem [resolvable:$true] %s19
      %25 = dma.hbm_to_vmem [thread:$0]  %s0, 2048, %s20, [#allocation3], 128, 128, 8
    $region5: #{tpu_custom_call.1} parent=1 // pred_fallthru
      _
    // Predicated region
    $region6: #{tpu_custom_call.1} parent=1 // pred_check
      _
    $region7: #{tpu_custom_call.1} parent=1 // pred_check_branch
      %27 = sbr.rel (0) target = $region9
    $region8: #{tpu_custom_call.1} parent=1 // pred_region
      %s29 = ssub.s32 2048, 2048
      %30 = vsyncadd [#allocation6], %s29
      %s31 = sshll.u32 [#allocation5], 4
      %s32 = int_to_ptr.vmem [resolvable:$true] %s31
      %37 = dma.hbm_to_vmem [thread:$0]  %s1, 2048, %s32, [#allocation6], 128, 128, 8
    $region9: #{tpu_custom_call.1} parent=1 // pred_fallthru
      _
    // Predicated region
    $region10: #{tpu_custom_call.1} parent=1 // pred_check
      _
    $region11: #{tpu_custom_call.1} parent=1 // pred_check_branch
      %39 = sbr.rel (0) target = $region13
    $region12: #{tpu_custom_call.1} parent=1 // pred_region
      _
    $region13: #{tpu_custom_call.1} parent=1 // pred_fallthru
      _
    // Predicated region
    $region14: #{tpu_custom_call.1} parent=1 // pred_check
      _
    $region15: #{tpu_custom_call.1} parent=1 // pred_check_branch
      %41 = sbr.rel (0) target = $region17
    $region16: #{tpu_custom_call.1} parent=1 // pred_region
      %42 = dma.done [#allocation3], 2048
    $region17: #{tpu_custom_call.1} parent=1 // pred_fallthru
      _
    // Predicated region
    $region18: #{tpu_custom_call.1} parent=1 // pred_check
      _
    $region19: #{tpu_custom_call.1} parent=1 // pred_check_branch
      %44 = sbr.rel (0) target = $region21
    $region20: #{tpu_custom_call.1} parent=1 // pred_region
      %45 = dma.done [#allocation6], 2048
    $region21: #{tpu_custom_call.1} parent=1 // pred_fallthru
      _
    %v46 = vld [vmem:[#allocation2] sm:$0xff]
    %v47 = vld [vmem:[#allocation2 + $0x8] sm:$0xff]
    %v48 = vld [vmem:[#allocation2 + $0x10] sm:$0xff]
    %v49 = vld [vmem:[#allocation2 + $0x18] sm:$0xff]
    %v50 = vld [vmem:[#allocation2 + $0x20] sm:$0xff]
    %v51 = vld [vmem:[#allocation2 + $0x28] sm:$0xff]
    %v52 = vld [vmem:[#allocation2 + $0x30] sm:$0xff]
    %v53 = vld [vmem:[#allocation2 + $0x38] sm:$0xff]
    %v54 = vld [vmem:[#allocation2 + $0x40] sm:$0xff]
    %v55 = vld [vmem:[#allocation2 + $0x48] sm:$0xff]
    %v56 = vld [vmem:[#allocation2 + $0x50] sm:$0xff]
    %v57 = vld [vmem:[#allocation2 + $0x58] sm:$0xff]
    %v58 = vld [vmem:[#allocation2 + $0x60] sm:$0xff]
    %v59 = vld [vmem:[#allocation2 + $0x68] sm:$0xff]
    %v60 = vld [vmem:[#allocation2 + $0x70] sm:$0xff]
    %v61 = vld [vmem:[#allocation2 + $0x78] sm:$0xff]
    %v62 = vld [vmem:[#allocation5] sm:$0xff]
    %v63 = vld [vmem:[#allocation5 + $0x8] sm:$0xff]
    %v64 = vld [vmem:[#allocation5 + $0x10] sm:$0xff]
    %v65 = vld [vmem:[#allocation5 + $0x18] sm:$0xff]
    %v66 = vld [vmem:[#allocation5 + $0x20] sm:$0xff]
    %v67 = vld [vmem:[#allocation5 + $0x28] sm:$0xff]
    %v68 = vld [vmem:[#allocation5 + $0x30] sm:$0xff]
    %v69 = vld [vmem:[#allocation5 + $0x38] sm:$0xff]
    %v70 = vld [vmem:[#allocation5 + $0x40] sm:$0xff]
    %v71 = vld [vmem:[#allocation5 + $0x48] sm:$0xff]
    %v72 = vld [vmem:[#allocation5 + $0x50] sm:$0xff]
    %v73 = vld [vmem:[#allocation5 + $0x58] sm:$0xff]
    %v74 = vld [vmem:[#allocation5 + $0x60] sm:$0xff]
    %v75 = vld [vmem:[#allocation5 + $0x68] sm:$0xff]
    %v76 = vld [vmem:[#allocation5 + $0x70] sm:$0xff]
    %v77 = vld [vmem:[#allocation5 + $0x78] sm:$0xff]
    %v78 = vld [vmem:[%s2] sm:$0x1]
    %v80 = vlaneseq
    %v81 = vshrl.u32 %v80, 7
    %v82 = vsub.s32 0, %v81
    %v83 = vrot.slane %v78, %v82
    %85 = vmatprep.subr.mxu0 0.0
    %86 = vmatpush1.msra.mxu0 %v62
    %87 = vmatprep.subr.mxu0 0.0
    %88 = vmatpush1.msra.mxu0 %v63
    %89 = vmatprep.subr.mxu0 0.0
    %90 = vmatpush1.msra.mxu0 %v64
    %91 = vmatprep.subr.mxu0 0.0
    %92 = vmatpush1.msra.mxu0 %v65
    %93 = vmatprep.subr.mxu0 0.0
    %94 = vmatpush1.msra.mxu0 %v66
    %95 = vmatprep.subr.mxu0 0.0
    %96 = vmatpush1.msra.mxu0 %v67
    %97 = vmatprep.subr.mxu0 0.0
    %98 = vmatpush1.msra.mxu0 %v68
    %99 = vmatprep.subr.mxu0 0.0
    %100 = vmatpush1.msra.mxu0 %v69
    %101 = vmatprep.subr.mxu0 0.0
    %102 = vmatpush1.msra.mxu0 %v70
    %103 = vmatprep.subr.mxu0 0.0
    %104 = vmatpush1.msra.mxu0 %v71
    %105 = vmatprep.subr.mxu0 0.0
    %106 = vmatpush1.msra.mxu0 %v72
    %107 = vmatprep.subr.mxu0 0.0
    %108 = vmatpush1.msra.mxu0 %v73
    %109 = vmatprep.subr.mxu0 0.0
    %110 = vmatpush1.msra.mxu0 %v74
    %111 = vmatprep.subr.mxu0 0.0
    %112 = vmatpush1.msra.mxu0 %v75
    %113 = vmatprep.subr.mxu0 0.0
    %114 = vmatpush1.msra.mxu0 %v76
    %115 = vmatprep.subr.mxu0 0.0
    %116 = vmatpush1.msra.mxu0 %v77
    %117 = vmatprep.subr.mxu0 0.0
    %118 = vmatpush1.msra.mxu0 0.0
    %119 = vmatprep.subr.mxu0 0.0
    %120 = vmatpush1.msra.mxu0 0.0
    %121 = vmatprep.subr.mxu0 0.0
    %122 = vmatpush1.msra.mxu0 0.0
    %123 = vmatprep.subr.mxu0 0.0
    %124 = vmatpush1.msra.mxu0 0.0
    %125 = vmatprep.subr.mxu0 0.0
    %126 = vmatpush1.msra.mxu0 0.0
    %127 = vmatprep.subr.mxu0 0.0
    %128 = vmatpush1.msra.mxu0 0.0
    %129 = vmatprep.subr.mxu0 0.0
    %130 = vmatpush1.msra.mxu0 0.0
    %131 = vmatprep.subr.mxu0 0.0
    %132 = vmatpush1.msra.mxu0 0.0
    %133 = vmatprep.subr.mxu0 0.0
    %134 = vmatpush1.msra.mxu0 0.0
    %135 = vmatprep.subr.mxu0 0.0
    %136 = vmatpush1.msra.mxu0 0.0
    %137 = vmatprep.subr.mxu0 0.0
    %138 = vmatpush1.msra.mxu0 0.0
    %139 = vmatprep.subr.mxu0 0.0
    %140 = vmatpush1.msra.mxu0 0.0
    %141 = vmatprep.subr.mxu0 0.0
    %142 = vmatpush1.msra.mxu0 0.0
    %143 = vmatprep.subr.mxu0 0.0
    %144 = vmatpush1.msra.mxu0 0.0
    %145 = vmatprep.subr.mxu0 0.0
    %146 = vmatpush1.msra.mxu0 0.0
    %147 = vmatprep.subr.mxu0 0.0
    %148 = vmatpush1.msra.mxu0 0.0
    %149 = vmatprep.mubr.f32.mxu0 0.0
    %150 = vmatmul.mubr.f32.gmra.mrb[0].mxu0 %v46
    %v151 = vpop.f32.mrb[0].mxu0
    %v152 = vadd.f32 %v83, %v151
    %v153 = vpop.f32.mrb[0].mxu0
    %154 = vmatprep.mubr.f32.mxu0 0.0
    %155 = vmatmul.mubr.f32.gmra.mrb[0].mxu0 %v47
    %v156 = vpop.f32.mrb[0].mxu0
    %v157 = vadd.f32 %v83, %v156
    %v158 = vpop.f32.mrb[0].mxu0
    %159 = vmatprep.mubr.f32.mxu0 0.0
    %160 = vmatmul.mubr.f32.gmra.mrb[0].mxu0 %v48
    %v161 = vpop.f32.mrb[0].mxu0
    %v162 = vadd.f32 %v83, %v161
    %v163 = vpop.f32.mrb[0].mxu0
    %164 = vmatprep.mubr.f32.mxu0 0.0
    %165 = vmatmul.mubr.f32.gmra.mrb[0].mxu0 %v49
    %v166 = vpop.f32.mrb[0].mxu0
    %v167 = vadd.f32 %v83, %v166
    %v168 = vpop.f32.mrb[0].mxu0
    %169 = vmatprep.mubr.f32.mxu0 0.0
    %170 = vmatmul.mubr.f32.gmra.mrb[0].mxu0 %v50
    %v171 = vpop.f32.mrb[0].mxu0
    %v172 = vadd.f32 %v83, %v171
    %v173 = vpop.f32.mrb[0].mxu0
    %174 = vmatprep.mubr.f32.mxu0 0.0
    %175 = vmatmul.mubr.f32.gmra.mrb[0].mxu0 %v51
    %v176 = vpop.f32.mrb[0].mxu0
    %v177 = vadd.f32 %v83, %v176
    %v178 = vpop.f32.mrb[0].mxu0
    %179 = vmatprep.mubr.f32.mxu0 0.0
    %180 = vmatmul.mubr.f32.gmra.mrb[0].mxu0 %v52
    %v181 = vpop.f32.mrb[0].mxu0
    %v182 = vadd.f32 %v83, %v181
    %v183 = vpop.f32.mrb[0].mxu0
    %184 = vmatprep.mubr.f32.mxu0 0.0
    %185 = vmatmul.mubr.f32.gmra.mrb[0].mxu0 %v53
    %v186 = vpop.f32.mrb[0].mxu0
    %v187 = vadd.f32 %v83, %v186
    %v188 = vpop.f32.mrb[0].mxu0
    %189 = vmatprep.mubr.f32.mxu0 0.0
    %190 = vmatmul.mubr.f32.gmra.mrb[0].mxu0 %v54
    %v191 = vpop.f32.mrb[0].mxu0
    %v192 = vadd.f32 %v83, %v191
    %v193 = vpop.f32.mrb[0].mxu0
    %194 = vmatprep.mubr.f32.mxu0 0.0
    %195 = vmatmul.mubr.f32.gmra.mrb[0].mxu0 %v55
    %v196 = vpop.f32.mrb[0].mxu0
    %v197 = vadd.f32 %v83, %v196
    %v198 = vpop.f32.mrb[0].mxu0
    %199 = vmatprep.mubr.f32.mxu0 0.0
    %200 = vmatmul.mubr.f32.gmra.mrb[0].mxu0 %v56
    %v201 = vpop.f32.mrb[0].mxu0
    %v202 = vadd.f32 %v83, %v201
    %v203 = vpop.f32.mrb[0].mxu0
    %204 = vmatprep.mubr.f32.mxu0 0.0
    %205 = vmatmul.mubr.f32.gmra.mrb[0].mxu0 %v57
    %v206 = vpop.f32.mrb[0].mxu0
    %v207 = vadd.f32 %v83, %v206
    %v208 = vpop.f32.mrb[0].mxu0
    %209 = vmatprep.mubr.f32.mxu0 0.0
    %210 = vmatmul.mubr.f32.gmra.mrb[0].mxu0 %v58
    %v211 = vpop.f32.mrb[0].mxu0
    %v212 = vadd.f32 %v83, %v211
    %v213 = vpop.f32.mrb[0].mxu0
    %214 = vmatprep.mubr.f32.mxu0 0.0
    %215 = vmatmul.mubr.f32.gmra.mrb[0].mxu0 %v59
    %v216 = vpop.f32.mrb[0].mxu0
    %v217 = vadd.f32 %v83, %v216
    %v218 = vpop.f32.mrb[0].mxu0
    %219 = vmatprep.mubr.f32.mxu0 0.0
    %220 = vmatmul.mubr.f32.gmra.mrb[0].mxu0 %v60
    %v221 = vpop.f32.mrb[0].mxu0
    %v222 = vadd.f32 %v83, %v221
    %v223 = vpop.f32.mrb[0].mxu0
    %224 = vmatprep.mubr.f32.mxu0 0.0
    %225 = vmatmul.mubr.f32.gmra.mrb[0].mxu0 %v61
    %v226 = vpop.f32.mrb[0].mxu0
    %v227 = vadd.f32 %v83, %v226
    %v228 = vpop.f32.mrb[0].mxu0
    %229 = vdwg.mxu0
    %230 = vst [vmem:[#allocation7] sm:$0xff] %v152
    %231 = vst [vmem:[#allocation7 + $0x8] sm:$0xff] %v157
    %232 = vst [vmem:[#allocation7 + $0x10] sm:$0xff] %v162
    %233 = vst [vmem:[#allocation7 + $0x18] sm:$0xff] %v167
    %234 = vst [vmem:[#allocation7 + $0x20] sm:$0xff] %v172
    %235 = vst [vmem:[#allocation7 + $0x28] sm:$0xff] %v177
    %236 = vst [vmem:[#allocation7 + $0x30] sm:$0xff] %v182
    %237 = vst [vmem:[#allocation7 + $0x38] sm:$0xff] %v187
    %238 = vst [vmem:[#allocation7 + $0x40] sm:$0xff] %v192
    %239 = vst [vmem:[#allocation7 + $0x48] sm:$0xff] %v197
    %240 = vst [vmem:[#allocation7 + $0x50] sm:$0xff] %v202
    %241 = vst [vmem:[#allocation7 + $0x58] sm:$0xff] %v207
    %242 = vst [vmem:[#allocation7 + $0x60] sm:$0xff] %v212
    %243 = vst [vmem:[#allocation7 + $0x68] sm:$0xff] %v217
    %244 = vst [vmem:[#allocation7 + $0x70] sm:$0xff] %v222
    %245 = vst [vmem:[#allocation7 + $0x78] sm:$0xff] %v227
    %vm246 = vcmp.ge.f32.partialorder %v152, 0.0
    %vm247 = vcmp.ge.f32.partialorder %v157, 0.0
    %vm248 = vcmp.ge.f32.partialorder %v162, 0.0
    %vm249 = vcmp.ge.f32.partialorder %v167, 0.0
    %vm250 = vcmp.ge.f32.partialorder %v172, 0.0
    %vm251 = vcmp.ge.f32.partialorder %v177, 0.0
    %vm252 = vcmp.ge.f32.partialorder %v182, 0.0
    %vm253 = vcmp.ge.f32.partialorder %v187, 0.0
    %vm254 = vcmp.ge.f32.partialorder %v192, 0.0
    %vm255 = vcmp.ge.f32.partialorder %v197, 0.0
    %vm256 = vcmp.ge.f32.partialorder %v202, 0.0
    %vm257 = vcmp.ge.f32.partialorder %v207, 0.0
    %vm258 = vcmp.ge.f32.partialorder %v212, 0.0
    %vm259 = vcmp.ge.f32.partialorder %v217, 0.0
    %vm260 = vcmp.ge.f32.partialorder %v222, 0.0
    %vm261 = vcmp.ge.f32.partialorder %v227, 0.0
    %v262 = vmul.f32 %v152, 0.01
    %v263 = vmul.f32 %v157, 0.01
    %v264 = vmul.f32 %v162, 0.01
    %v265 = vmul.f32 %v167, 0.01
    %v266 = vmul.f32 %v172, 0.01
    %v267 = vmul.f32 %v177, 0.01
    %v268 = vmul.f32 %v182, 0.01
    %v269 = vmul.f32 %v187, 0.01
    %v270 = vmul.f32 %v192, 0.01
    %v271 = vmul.f32 %v197, 0.01
    %v272 = vmul.f32 %v202, 0.01
    %v273 = vmul.f32 %v207, 0.01
    %v274 = vmul.f32 %v212, 0.01
    %v275 = vmul.f32 %v217, 0.01
    %v276 = vmul.f32 %v222, 0.01
    %v277 = vmul.f32 %v227, 0.01
    %v278 = vsel %vm246, %v152, %v262
    %v279 = vsel %vm247, %v157, %v263
    %v280 = vsel %vm248, %v162, %v264
    %v281 = vsel %vm249, %v167, %v265
    %v282 = vsel %vm250, %v172, %v266
    %v283 = vsel %vm251, %v177, %v267
    %v284 = vsel %vm252, %v182, %v268
    %v285 = vsel %vm253, %v187, %v269
    %v286 = vsel %vm254, %v192, %v270
    %v287 = vsel %vm255, %v197, %v271
    %v288 = vsel %vm256, %v202, %v272
    %v289 = vsel %vm257, %v207, %v273
    %v290 = vsel %vm258, %v212, %v274
    %v291 = vsel %vm259, %v217, %v275
    %v292 = vsel %vm260, %v222, %v276
    %v293 = vsel %vm261, %v227, %v277
    %v294 = vmul.f32 %v278, %v278
    %v295 = vmul.f32 %v279, %v279
    %v296 = vmul.f32 %v280, %v280
    %v297 = vmul.f32 %v281, %v281
    %v298 = vmul.f32 %v282, %v282
    %v299 = vmul.f32 %v283, %v283
    %v300 = vmul.f32 %v284, %v284
    %v301 = vmul.f32 %v285, %v285
    %v302 = vmul.f32 %v286, %v286
    %v303 = vmul.f32 %v287, %v287
    %v304 = vmul.f32 %v288, %v288
    %v305 = vmul.f32 %v289, %v289
    %v306 = vmul.f32 %v290, %v290
    %v307 = vmul.f32 %v291, %v291
    %v308 = vmul.f32 %v292, %v292
    %v309 = vmul.f32 %v293, %v293
    %310 = vadd.xlane.f32.xlu0 %v294
    %v311 = vpop.xlane.xlu0 %310
    %312 = vadd.xlane.f32.xlu0 %v295
    %v313 = vpop.xlane.xlu0 %312
    %314 = vadd.xlane.f32.xlu0 %v296
    %v315 = vpop.xlane.xlu0 %314
    %316 = vadd.xlane.f32.xlu0 %v297
    %v317 = vpop.xlane.xlu0 %316
    %318 = vadd.xlane.f32.xlu0 %v298
    %v319 = vpop.xlane.xlu0 %318
    %320 = vadd.xlane.f32.xlu0 %v299
    %v321 = vpop.xlane.xlu0 %320
    %322 = vadd.xlane.f32.xlu0 %v300
    %v323 = vpop.xlane.xlu0 %322
    %324 = vadd.xlane.f32.xlu0 %v301
    %v325 = vpop.xlane.xlu0 %324
    %326 = vadd.xlane.f32.xlu0 %v302
    %v327 = vpop.xlane.xlu0 %326
    %328 = vadd.xlane.f32.xlu0 %v303
    %v329 = vpop.xlane.xlu0 %328
    %330 = vadd.xlane.f32.xlu0 %v304
    %v331 = vpop.xlane.xlu0 %330
    %332 = vadd.xlane.f32.xlu0 %v305
    %v333 = vpop.xlane.xlu0 %332
    %334 = vadd.xlane.f32.xlu0 %v306
    %v335 = vpop.xlane.xlu0 %334
    %336 = vadd.xlane.f32.xlu0 %v307
    %v337 = vpop.xlane.xlu0 %336
    %338 = vadd.xlane.f32.xlu0 %v308
    %v339 = vpop.xlane.xlu0 %338
    %340 = vadd.xlane.f32.xlu0 %v309
    %v341 = vpop.xlane.xlu0 %340
    %v342 = vmax.f32 %v311, 1e-24
    %v343 = vmax.f32 %v313, 1e-24
    %v344 = vmax.f32 %v315, 1e-24
    %v345 = vmax.f32 %v317, 1e-24
    %v346 = vmax.f32 %v319, 1e-24
    %v347 = vmax.f32 %v321, 1e-24
    %v348 = vmax.f32 %v323, 1e-24
    %v349 = vmax.f32 %v325, 1e-24
    %v350 = vmax.f32 %v327, 1e-24
    %v351 = vmax.f32 %v329, 1e-24
    %v352 = vmax.f32 %v331, 1e-24
    %v353 = vmax.f32 %v333, 1e-24
    %v354 = vmax.f32 %v335, 1e-24
    %v355 = vmax.f32 %v337, 1e-24
    %v356 = vmax.f32 %v339, 1e-24
    %v357 = vmax.f32 %v341, 1e-24
    %v358 = vrsqrt.pop %v342
    %v359 = vrsqrt.pop %v343
    %v360 = vrsqrt.pop %v344
    %v361 = vrsqrt.pop %v345
    %v362 = vrsqrt.pop %v346
    %v363 = vrsqrt.pop %v347
    %v364 = vrsqrt.pop %v348
    %v365 = vrsqrt.pop %v349
    %v366 = vrsqrt.pop %v350
    %v367 = vrsqrt.pop %v351
    %v368 = vrsqrt.pop %v352
    %v369 = vrsqrt.pop %v353
    %v370 = vrsqrt.pop %v354
    %v371 = vrsqrt.pop %v355
    %v372 = vrsqrt.pop %v356
    %v373 = vrsqrt.pop %v357
    %v374 = vmul.f32 %v278, %v358
    %v375 = vmul.f32 %v279, %v359
    %v376 = vmul.f32 %v280, %v360
    %v377 = vmul.f32 %v281, %v361
    %v378 = vmul.f32 %v282, %v362
    %v379 = vmul.f32 %v283, %v363
    %v380 = vmul.f32 %v284, %v364
    %v381 = vmul.f32 %v285, %v365
    %v382 = vmul.f32 %v286, %v366
    %v383 = vmul.f32 %v287, %v367
    %v384 = vmul.f32 %v288, %v368
    %v385 = vmul.f32 %v289, %v369
    %v386 = vmul.f32 %v290, %v370
    %v387 = vmul.f32 %v291, %v371
    %v388 = vmul.f32 %v292, %v372
    %v389 = vmul.f32 %v293, %v373
    %390 = vst [vmem:[#allocation8] sm:$0xff] %v374
    %391 = vst [vmem:[#allocation8 + $0x8] sm:$0xff] %v375
    %392 = vst [vmem:[#allocation8 + $0x10] sm:$0xff] %v376
    %393 = vst [vmem:[#allocation8 + $0x18] sm:$0xff] %v377
    %394 = vst [vmem:[#allocation8 + $0x20] sm:$0xff] %v378
    %395 = vst [vmem:[#allocation8 + $0x28] sm:$0xff] %v379
    %396 = vst [vmem:[#allocation8 + $0x30] sm:$0xff] %v380
    %397 = vst [vmem:[#allocation8 + $0x38] sm:$0xff] %v381
    %398 = vst [vmem:[#allocation8 + $0x40] sm:$0xff] %v382
    %399 = vst [vmem:[#allocation8 + $0x48] sm:$0xff] %v383
    %400 = vst [vmem:[#allocation8 + $0x50] sm:$0xff] %v384
    %401 = vst [vmem:[#allocation8 + $0x58] sm:$0xff] %v385
    %402 = vst [vmem:[#allocation8 + $0x60] sm:$0xff] %v386
    %403 = vst [vmem:[#allocation8 + $0x68] sm:$0xff] %v387
    %404 = vst [vmem:[#allocation8 + $0x70] sm:$0xff] %v388
    %405 = vst [vmem:[#allocation8 + $0x78] sm:$0xff] %v389
    // Predicated region
    $region22: #{tpu_custom_call.1} parent=1 // pred_check
      _
    $region23: #{tpu_custom_call.1} parent=1 // pred_check_branch
      %407 = sbr.rel (0) target = $region25
    $region24: #{tpu_custom_call.1} parent=1 // pred_region
      %s409 = ssub.s32 2048, 2048
      %410 = vsyncadd [#allocation4], %s409
      %s411 = sshll.u32 [#allocation7], 4
      %s412 = int_to_ptr.vmem [resolvable:$true] %s411
      %417 = dma.vmem_to_hbm [thread:$0]  %s412, 2048, %s3, [#allocation4], 128, 128, 8
    $region25: #{tpu_custom_call.1} parent=1 // pred_fallthru
      _
    // Predicated region
    $region26: #{tpu_custom_call.1} parent=1 // pred_check
      _
    $region27: #{tpu_custom_call.1} parent=1 // pred_check_branch
      %419 = sbr.rel (0) target = $region29
    $region28: #{tpu_custom_call.1} parent=1 // pred_region
      %s421 = ssub.s32 2048, 2048
      %422 = vsyncadd [#allocation9], %s421
      %s423 = sshll.u32 [#allocation8], 4
      %s424 = int_to_ptr.vmem [resolvable:$true] %s423
      %429 = dma.vmem_to_hbm [thread:$0]  %s424, 2048, %s4, [#allocation9], 128, 128, 8
    $region29: #{tpu_custom_call.1} parent=1 // pred_fallthru
      _
    // Predicated region
    $region30: #{tpu_custom_call.1} parent=1 // pred_check
      _
    $region31: #{tpu_custom_call.1} parent=1 // pred_check_branch
      %431 = sbr.rel (0) target = $region33
    $region32: #{tpu_custom_call.1} parent=1 // pred_region
      %432 = dma.done [#allocation4], 2048
    $region33: #{tpu_custom_call.1} parent=1 // pred_fallthru
      _
    // Predicated region
    $region34: #{tpu_custom_call.1} parent=1 // pred_check
      _
    $region35: #{tpu_custom_call.1} parent=1 // pred_check_branch
      %434 = sbr.rel (0) target = $region37
    $region36: #{tpu_custom_call.1} parent=1 // pred_region
      %435 = dma.done [#allocation9], 2048
    $region37: #{tpu_custom_call.1} parent=1 // pred_fallthru
      _
    %436 = vsyncpa [#allocation3], 1
    %437 = vsyncpa [#allocation6], 1
    %438 = vsyncpa [#allocation4], 1
    %439 = vsyncpa [#allocation9], 1

</llo_original>
